<compile_context>
chip_gen: v6e
topology: v6e:2x2x1
jax: 0.10.0
libtpu: 0.0.40
codegen_flags: <defaults>
</compile_context>

<pallas_src>
import math
import functools

import jax
import jax.numpy as jnp
from jax.experimental import pallas as pl
from jax.experimental.pallas import tpu as pltpu


# ----------------------------------------------------------------------------
# Pallas kernel: one batch-block (Bb batch elements) per grid step.
# ----------------------------------------------------------------------------
def _encoder_kernel(x_ref, w_in_ref, b_emb_ref, w_base_ref, w_u_ref, w_v_ref,
                    gq_ref, bq_ref, gk_ref, bk_ref,
                    w_fcxy_ref, w_oxy_ref, b_xy_ref, out_ref,
                    *, bb, k, d, e, s, oxyp, eps):
    f32 = jnp.float32
    bf16 = jnp.bfloat16

    x = x_ref[...].astype(bf16)                               # (M, V), M = bb*k

    # ---- single MXU push for both input-side matmuls --------------------
    #   cat = [ x @ w_xy_pad | x @ w_emb ]
    cat = jnp.dot(x, w_in_ref[...], preferred_element_type=f32)   # (M, oxyp+d)
    x_xy = cat[:, :oxyp]                                      # residual @ heads
    emb = jnp.maximum(cat[:, oxyp:oxyp + d] + b_emb_ref[...], 0.0)  # (M, d) f32

    # ---- ScaleNorm: x / max(||x||*d^-0.5, eps) * g  (g folded into weights) --
    inv = jnp.minimum(
        jax.lax.rsqrt(jnp.sum(emb * emb, axis=-1, keepdims=True) / d),
        1.0 / eps)
    y = (emb * inv).astype(bf16)                              # (M, d)

    # ---- GAU uv projections (split, lane-aligned weights) + SiLU ----------
    base = jnp.dot(y, w_base_ref[...], preferred_element_type=f32)   # (M, s)
    u = jnp.dot(y, w_u_ref[...], preferred_element_type=f32)         # (M, e)
    v = jnp.dot(y, w_v_ref[...], preferred_element_type=f32)         # (M, e)
    base = base * jax.nn.sigmoid(base)
    u = u * jax.nn.sigmoid(u)
    v = v * jax.nn.sigmoid(v)

    # q has 1/sqrt(s) folded into gamma_q / beta_q
    q = base * gq_ref[...] + bq_ref[...]                      # (M, s)
    kq = base * gk_ref[...] + bk_ref[...]                     # (M, s)

    qb = q.reshape(bb, k, s).astype(bf16)
    kb = kq.reshape(bb, k, s).astype(bf16)
    vb = v.reshape(bb, k, e).astype(bf16)

    qk = jnp.einsum('bts,bks->btk', qb, kb, preferred_element_type=f32)
    kern = jnp.square(jnp.maximum(qk, 0.0)).astype(bf16)
    kv = jnp.einsum('btk,bke->bte', kern, vb, preferred_element_type=f32)
    attn = (u * kv.reshape(bb * k, e)).astype(bf16)           # (M, e)

    # ---- fully fused tail, lane-dense (M, oxyp) store ---------------------
    out_ref[...] = (x_xy
                    + jnp.dot(emb.astype(bf16), w_fcxy_ref[...],
                              preferred_element_type=f32)
                    + jnp.dot(attn, w_oxy_ref[...], preferred_element_type=f32)
                    + b_xy_ref[...])


# ----------------------------------------------------------------------------
# Param preparation: transpose/fold/fuse/cast the PyTorch-style weights.
# ----------------------------------------------------------------------------
def prepare_params(raw, *, e, s):
    f32 = jnp.float32
    bf16 = jnp.bfloat16

    g = raw["g"][0, 0]
    w_uv = raw["w_uv"] * g                                   # fold ScaleNorm gain
    w_u = w_uv[:, :e]
    w_v = w_uv[:, e:2 * e]
    w_base = w_uv[:, 2 * e:]

    inv_sqrt_s = 1.0 / math.sqrt(s)                          # fold 1/sqrt(s) into q
    gamma_q = raw["gamma"][0:1] * inv_sqrt_s
    beta_q = raw["beta"][0:1] * inv_sqrt_s
    gamma_k = raw["gamma"][1:2]
    beta_k = raw["beta"][1:2]

    ox = raw["w_x"].shape[1]
    oy = raw["w_y"].shape[1]
    oxy = ox + oy
    oxyp = ((oxy + 127) // 128) * 128
    w_xy = jnp.concatenate([raw["w_x"], raw["w_y"]], axis=1)   # (V, OX+OY)
    if oxyp != oxy:                                          # lane-dense output
        w_xy = jnp.pad(w_xy, ((0, 0), (0, oxyp - oxy)))

    # tail fused straight into the padded head space (all f32, cast at the end)
    w_fc_rs = raw["res_scale"].T * raw["w_fc"]               # (D, V)
    w_fcxy = w_fc_rs @ w_xy                                  # (D, OXYP)
    w_oxy = raw["w_o"] @ raw["w_fc"] @ w_xy                  # (E, OXYP)
    b_xy = raw["b_fc"] @ w_xy                                # (1, OXYP)

    # single input-side matmul weight: [ w_xy_pad | w_emb ]
    w_in = jnp.concatenate([w_xy, raw["w_emb"]], axis=1)     # (V, OXYP + D)

    pp = dict(
        w_in=w_in.astype(bf16),
        b_emb=raw["b_emb"].astype(f32),
        w_base=w_base.astype(bf16),
        w_u=w_u.astype(bf16),
        w_v=w_v.astype(bf16),
        gamma_q=gamma_q.astype(f32), beta_q=beta_q.astype(f32),
        gamma_k=gamma_k.astype(f32), beta_k=beta_k.astype(f32),
        w_fcxy=w_fcxy.astype(bf16),
        w_oxy=w_oxy.astype(bf16),
        b_xy=b_xy.astype(f32),
    )
    return pp, (ox, oy, oxyp)


_WEIGHT_ORDER = ["w_in", "b_emb", "w_base", "w_u", "w_v",
                 "gamma_q", "beta_q", "gamma_k", "beta_k",
                 "w_fcxy", "w_oxy", "b_xy"]


# ----------------------------------------------------------------------------
# Wrapper
# ----------------------------------------------------------------------------
def transformer_encoder0(x, pp, *, e, s, out_dims, eps=1e-5, block_batch=None):
    B, K, V = x.shape
    OX, OY, OXYP = out_dims
    D = pp["b_emb"].shape[1]

    # pick Bb so Bb*K targets ~512 rows, Bb divides B
    if block_batch is None:
        bb = min(B, max(1, 512 // K))
        while B % bb:
            bb -= 1
    else:
        bb = block_batch
        assert B % bb == 0
    M = bb * K
    grid = (B // bb,)

    x_flat = x.reshape(B * K, V)

    def fullspec(arr):
        zeros = (0,) * arr.ndim
        return pl.BlockSpec(arr.shape, lambda b, _z=zeros: _z)

    in_specs = ([pl.BlockSpec((M, V), lambda b: (b, 0))]
                + [fullspec(pp[n]) for n in _WEIGHT_ORDER])
    out_specs = pl.BlockSpec((M, OXYP), lambda b: (b, 0))
    out_shape = jax.ShapeDtypeStruct((B * K, OXYP), jnp.float32)

    kernel = functools.partial(_encoder_kernel, bb=bb, k=K, d=D, e=e, s=s,
                               oxyp=OXYP, eps=eps)

    out = pl.pallas_call(
        kernel,
        out_shape=out_shape,
        grid_spec=pltpu.PrefetchScalarGridSpec(
            num_scalar_prefetch=0,
            grid=grid,
            in_specs=in_specs,
            out_specs=out_specs,
        ),
        compiler_params=pltpu.CompilerParams(
            dimension_semantics=("parallel",)),
    )(x_flat, *[pp[n] for n in _WEIGHT_ORDER])

    xc = out[:, :OX].reshape(B, K, OX)
    yc = out[:, OX:OX + OY].reshape(B, K, OY)
    return xc, yc


# ----------------------------------------------------------------------------
# References for validation.
# ----------------------------------------------------------------------------
def matched_reference(x, pp, *, e, s, out_dims, eps=1e-5):
    """Same bf16/fused math as the kernel, in plain JAX (tight check)."""
    f32, bf16 = jnp.float32, jnp.bfloat16
    B, K, V = x.shape
    OX, OY, OXYP = out_dims
    D = pp["b_emb"].shape[1]
    xf = x.reshape(B * K, V).astype(bf16)

    cat = jnp.dot(xf, pp["w_in"], preferred_element_type=f32)
    x_xy = cat[:, :OXYP]
    emb = jnp.maximum(cat[:, OXYP:OXYP + D] + pp["b_emb"], 0.0)
    inv = jnp.minimum(jax.lax.rsqrt(jnp.sum(emb * emb, -1, keepdims=True) / D),
                      1.0 / eps)
    y = (emb * inv).astype(bf16)

    silu = lambda t: t * jax.nn.sigmoid(t)
    base = silu(jnp.dot(y, pp["w_base"], preferred_element_type=f32))
    u = silu(jnp.dot(y, pp["w_u"], preferred_element_type=f32))
    v = silu(jnp.dot(y, pp["w_v"], preferred_element_type=f32))

    q = base * pp["gamma_q"] + pp["beta_q"]
    kq = base * pp["gamma_k"] + pp["beta_k"]
    qb = q.reshape(B, K, s).astype(bf16)
    kb = kq.reshape(B, K, s).astype(bf16)
    vb = v.reshape(B, K, e).astype(bf16)

    qk = jnp.einsum('bts,bks->btk', qb, kb, preferred_element_type=f32)
    kern = jnp.square(jnp.maximum(qk, 0.0)).astype(bf16)
    kv = jnp.einsum('btk,bke->bte', kern, vb,
                    preferred_element_type=f32).reshape(B * K, e)
    attn = (u * kv).astype(bf16)

    out = (x_xy
           + jnp.dot(emb.astype(bf16), pp["w_fcxy"], preferred_element_type=f32)
           + jnp.dot(attn, pp["w_oxy"], preferred_element_type=f32)
           + pp["b_xy"])
    return out[:, :OX].reshape(B, K, OX), out[:, OX:OX + OY].reshape(B, K, OY)


def reference_forward_f32(x, p, *, e, s, eps=1e-5):
    """Original module math, full f32 (loose sanity check for bf16 kernel)."""
    emb = jax.nn.relu(x @ p["w_emb"] + p["b_emb"])
    d = emb.shape[-1]
    norm = jnp.sqrt(jnp.sum(emb * emb, axis=-1, keepdims=True)) * (d ** -0.5)
    y = emb / jnp.maximum(norm, eps) * p["g"][0, 0]
    uv = y @ p["w_uv"]
    uv = uv * jax.nn.sigmoid(uv)
    u, v, base = uv[..., :e], uv[..., e:2 * e], uv[..., 2 * e:]
    q = base * p["gamma"][0] + p["beta"][0]
    k = base * p["gamma"][1] + p["beta"][1]
    qk = jnp.einsum("bts,bks->btk", q, k)
    kern = jnp.square(jax.nn.relu(qk / math.sqrt(s)))
    attn = u * jnp.einsum("btk,bke->bte", kern, v)
    gau = attn @ p["w_o"]
    out = emb * p["res_scale"] + gau
    f = out @ p["w_fc"] + p["b_fc"] + x
    return f @ p["w_x"], f @ p["w_y"]


# ----------------------------------------------------------------------------
# Deterministic parameter construction + demo
# ----------------------------------------------------------------------------
if __name__ == "__main__":
    B, K, H, W = 2, 8, 16, 16          # input heatmaps (B, K, H, W)
    V = H * W                           # vocab_size = 256
    D = 32                              # embed_dim
    EXP = 2                             # expansion_factor
    E = D * EXP                         # GAU expanded dim = 64
    S = 128                             # GAU s
    SPLIT = 2.0                         # SIMDR_SPLIT_RATIO
    OX = int(W * SPLIT)                 # mlp_head_x out = 32
    OY = int(H * SPLIT)                 # mlp_head_y out = 32

    keys = jax.random.split(jax.random.PRNGKey(42), 10)
    sc = 0.05
    raw = {
        "w_emb": sc * jax.random.normal(keys[0], (V, D), jnp.float32),
        "b_emb": sc * jax.random.normal(keys[1], (1, D), jnp.float32),
        "w_uv": sc * jax.random.normal(keys[2], (D, 2 * E + S), jnp.float32),
        "gamma": jax.random.uniform(keys[3], (2, S), jnp.float32),
        "beta": jax.random.uniform(keys[4], (2, S), jnp.float32),
        "g": jnp.ones((1, 1), jnp.float32),
        "w_o": sc * jax.random.normal(keys[5], (E, D), jnp.float32),
        "res_scale": jnp.ones((1, D), jnp.float32),
        "w_fc": sc * jax.random.normal(keys[6], (D, V), jnp.float32),
        "b_fc": sc * jax.random.normal(keys[7], (1, V), jnp.float32),
        "w_x": sc * jax.random.normal(keys[8], (V, OX), jnp.float32),
        "w_y": sc * jax.random.normal(keys[9], (V, OY), jnp.float32),
    }

    # deterministic input (B, K, H, W) flattened to (B, K, V)
    x_img = jax.random.normal(jax.random.PRNGKey(0), (B, K, H, W), jnp.float32)
    x = x_img.reshape(B, K, -1)

    pp, out_dims = prepare_params(raw, e=E, s=S)

    xc, yc = transformer_encoder0(x, pp, e=E, s=S, out_dims=out_dims)
    xc = jax.block_until_ready(xc)
    yc = jax.block_until_ready(yc)
    assert xc.shape == (B, K, OX) and yc.shape == (B, K, OY)

    # tight check: kernel vs identical bf16/fused math in plain JAX
    xm, ym = matched_reference(x, pp, e=E, s=S, out_dims=out_dims)
    assert jnp.allclose(xc, xm, atol=5e-3, rtol=5e-3)
    assert jnp.allclose(yc, ym, atol=5e-3, rtol=5e-3)

    # loose sanity check: kernel vs original full-f32 module math
    xr, yr = reference_forward_f32(x, raw, e=E, s=S)
    assert jnp.allclose(xc, xr, atol=5e-2, rtol=5e-2)
    assert jnp.allclose(yc, yr, atol=5e-2, rtol=5e-2)

    print("KERNEL_OK")
</pallas_src>

<mosaic_0001>
module attributes {stable_mosaic.version = 11 : i64} {
  func.func @_encoder_kernel(%arg0: i32, %arg1: memref<16x256xf32, #tpu.memory_space<vmem>>, %arg2: memref<256x160xbf16, #tpu.memory_space<vmem>>, %arg3: memref<1x32xf32, #tpu.memory_space<vmem>>, %arg4: memref<32x128xbf16, #tpu.memory_space<vmem>>, %arg5: memref<32x64xbf16, #tpu.memory_space<vmem>>, %arg6: memref<32x64xbf16, #tpu.memory_space<vmem>>, %arg7: memref<1x128xf32, #tpu.memory_space<vmem>>, %arg8: memref<1x128xf32, #tpu.memory_space<vmem>>, %arg9: memref<1x128xf32, #tpu.memory_space<vmem>>, %arg10: memref<1x128xf32, #tpu.memory_space<vmem>>, %arg11: memref<32x128xbf16, #tpu.memory_space<vmem>>, %arg12: memref<64x128xbf16, #tpu.memory_space<vmem>>, %arg13: memref<1x128xf32, #tpu.memory_space<vmem>>, %arg14: memref<16x128xf32, #tpu.memory_space<vmem>>) attributes {dimension_semantics = [#tpu.dimension_semantics<parallel>], iteration_bounds = array<i64: 1>, scalar_prefetch = 0 : i64, scratch_operands = 0 : i64, tpu.core_type = #tpu.core_type<tc>, window_params = [{transform_indices = @transform_0, window_bounds = array<i64: 16, 256>}, {pipeline_mode = #tpu.pipeline_mode<synchronous>, transform_indices = @transform_1, window_bounds = array<i64: 256, 160>}, {pipeline_mode = #tpu.pipeline_mode<synchronous>, transform_indices = @transform_2, window_bounds = array<i64: 1, 32>}, {pipeline_mode = #tpu.pipeline_mode<synchronous>, transform_indices = @transform_3, window_bounds = array<i64: 32, 128>}, {pipeline_mode = #tpu.pipeline_mode<synchronous>, transform_indices = @transform_4, window_bounds = array<i64: 32, 64>}, {pipeline_mode = #tpu.pipeline_mode<synchronous>, transform_indices = @transform_5, window_bounds = array<i64: 32, 64>}, {pipeline_mode = #tpu.pipeline_mode<synchronous>, transform_indices = @transform_6, window_bounds = array<i64: 1, 128>}, {pipeline_mode = #tpu.pipeline_mode<synchronous>, transform_indices = @transform_7, window_bounds = array<i64: 1, 128>}, {pipeline_mode = #tpu.pipeline_mode<synchronous>, transform_indices = @transform_8, window_bounds = array<i64: 1, 128>}, {pipeline_mode = #tpu.pipeline_mode<synchronous>, transform_indices = @transform_9, window_bounds = array<i64: 1, 128>}, {pipeline_mode = #tpu.pipeline_mode<synchronous>, transform_indices = @transform_10, window_bounds = array<i64: 32, 128>}, {pipeline_mode = #tpu.pipeline_mode<synchronous>, transform_indices = @transform_11, window_bounds = array<i64: 64, 128>}, {pipeline_mode = #tpu.pipeline_mode<synchronous>, transform_indices = @transform_12, window_bounds = array<i64: 1, 128>}, {transform_indices = @transform_13, window_bounds = array<i64: 16, 128>}]} {
    %c0 = arith.constant 0 : index
    %c0_0 = arith.constant 0 : index
    %0 = vector.load %arg1[%c0, %c0_0] : memref<16x256xf32, #tpu.memory_space<vmem>>, vector<16x256xf32>
    %1 = arith.truncf %0 : vector<16x256xf32> to vector<16x256xbf16>
    %c0_1 = arith.constant 0 : index
    %c0_2 = arith.constant 0 : index
    %2 = vector.load %arg2[%c0_1, %c0_2] : memref<256x160xbf16, #tpu.memory_space<vmem>>, vector<256x160xbf16>
    %cst = arith.constant dense<0.000000e+00> : vector<16x160xf32>
    %3 = tpu.matmul %1, %2, %cst {dimension_numbers = #tpu.dot_dimension_numbers<[1], [0], [0], [1], [0, 0, 1, 1], [], []>} : vector<16x256xbf16>, vector<256x160xbf16>, vector<16x160xf32> -> vector<16x160xf32>
    %4 = vector.extract_strided_slice %3 {offsets = [0, 0], sizes = [16, 128], strides = [1, 1]} : vector<16x160xf32> to vector<16x128xf32>
    %5 = vector.extract_strided_slice %3 {offsets = [0, 128], sizes = [16, 32], strides = [1, 1]} : vector<16x160xf32> to vector<16x32xf32>
    %c0_3 = arith.constant 0 : index
    %c0_4 = arith.constant 0 : index
    %6 = vector.load %arg3[%c0_3, %c0_4] : memref<1x32xf32, #tpu.memory_space<vmem>>, vector<1x32xf32>
    %7 = vector.broadcast %6 : vector<1x32xf32> to vector<16x32xf32>
    %8 = arith.addf %5, %7 : vector<16x32xf32>
    %cst_5 = arith.constant 0.000000e+00 : f32
    %9 = vector.broadcast %cst_5 : f32 to vector<16x32xf32>
    %10 = arith.maximumf %8, %9 : vector<16x32xf32>
    %11 = arith.mulf %10, %10 : vector<16x32xf32>
    %cst_6 = arith.constant dense<0.000000e+00> : vector<16xf32>
    %12 = vector.multi_reduction <add>, %11, %cst_6 [1] : vector<16x32xf32> to vector<16xf32>
    %13 = vector.shape_cast %12 : vector<16xf32> to vector<16x1xf32>
    %cst_7 = arith.constant 3.200000e+01 : f32
    %14 = vector.broadcast %cst_7 : f32 to vector<16x1xf32>
    %15 = arith.divf %13, %14 : vector<16x1xf32>
    %16 = math.rsqrt %15 : vector<16x1xf32>
    %cst_8 = arith.constant 1.000000e+05 : f32
    %17 = vector.broadcast %cst_8 : f32 to vector<16x1xf32>
    %18 = arith.minimumf %16, %17 : vector<16x1xf32>
    %19 = vector.broadcast %18 : vector<16x1xf32> to vector<16x32xf32>
    %20 = arith.mulf %10, %19 : vector<16x32xf32>
    %21 = arith.truncf %20 : vector<16x32xf32> to vector<16x32xbf16>
    %c0_9 = arith.constant 0 : index
    %c0_10 = arith.constant 0 : index
    %22 = vector.load %arg4[%c0_9, %c0_10] : memref<32x128xbf16, #tpu.memory_space<vmem>>, vector<32x128xbf16>
    %cst_11 = arith.constant dense<0.000000e+00> : vector<16x128xf32>
    %23 = tpu.matmul %21, %22, %cst_11 {dimension_numbers = #tpu.dot_dimension_numbers<[1], [0], [0], [1], [0, 0, 1, 1], [], []>} : vector<16x32xbf16>, vector<32x128xbf16>, vector<16x128xf32> -> vector<16x128xf32>
    %c0_12 = arith.constant 0 : index
    %c0_13 = arith.constant 0 : index
    %24 = vector.load %arg5[%c0_12, %c0_13] : memref<32x64xbf16, #tpu.memory_space<vmem>>, vector<32x64xbf16>
    %cst_14 = arith.constant dense<0.000000e+00> : vector<16x64xf32>
    %25 = tpu.matmul %21, %24, %cst_14 {dimension_numbers = #tpu.dot_dimension_numbers<[1], [0], [0], [1], [0, 0, 1, 1], [], []>} : vector<16x32xbf16>, vector<32x64xbf16>, vector<16x64xf32> -> vector<16x64xf32>
    %c0_15 = arith.constant 0 : index
    %c0_16 = arith.constant 0 : index
    %26 = vector.load %arg6[%c0_15, %c0_16] : memref<32x64xbf16, #tpu.memory_space<vmem>>, vector<32x64xbf16>
    %cst_17 = arith.constant dense<0.000000e+00> : vector<16x64xf32>
    %27 = tpu.matmul %21, %26, %cst_17 {dimension_numbers = #tpu.dot_dimension_numbers<[1], [0], [0], [1], [0, 0, 1, 1], [], []>} : vector<16x32xbf16>, vector<32x64xbf16>, vector<16x64xf32> -> vector<16x64xf32>
    %28 = arith.negf %23 : vector<16x128xf32>
    %29 = math.exp %28 : vector<16x128xf32>
    %cst_18 = arith.constant 1.000000e+00 : f32
    %30 = vector.broadcast %cst_18 : f32 to vector<16x128xf32>
    %31 = arith.addf %30, %29 : vector<16x128xf32>
    %32 = arith.divf %30, %31 : vector<16x128xf32>
    %33 = arith.mulf %23, %32 : vector<16x128xf32>
    %34 = arith.negf %25 : vector<16x64xf32>
    %35 = math.exp %34 : vector<16x64xf32>
    %cst_19 = arith.constant 1.000000e+00 : f32
    %36 = vector.broadcast %cst_19 : f32 to vector<16x64xf32>
    %37 = arith.addf %36, %35 : vector<16x64xf32>
    %38 = arith.divf %36, %37 : vector<16x64xf32>
    %39 = arith.mulf %25, %38 : vector<16x64xf32>
    %40 = arith.negf %27 : vector<16x64xf32>
    %41 = math.exp %40 : vector<16x64xf32>
    %cst_20 = arith.constant 1.000000e+00 : f32
    %42 = vector.broadcast %cst_20 : f32 to vector<16x64xf32>
    %43 = arith.addf %42, %41 : vector<16x64xf32>
    %44 = arith.divf %42, %43 : vector<16x64xf32>
    %45 = arith.mulf %27, %44 : vector<16x64xf32>
    %c0_21 = arith.constant 0 : index
    %c0_22 = arith.constant 0 : index
    %46 = vector.load %arg7[%c0_21, %c0_22] : memref<1x128xf32, #tpu.memory_space<vmem>>, vector<1x128xf32>
    %47 = vector.broadcast %46 : vector<1x128xf32> to vector<16x128xf32>
    %48 = arith.mulf %33, %47 : vector<16x128xf32>
    %c0_23 = arith.constant 0 : index
    %c0_24 = arith.constant 0 : index
    %49 = vector.load %arg8[%c0_23, %c0_24] : memref<1x128xf32, #tpu.memory_space<vmem>>, vector<1x128xf32>
    %50 = vector.broadcast %49 : vector<1x128xf32> to vector<16x128xf32>
    %51 = arith.addf %48, %50 : vector<16x128xf32>
    %c0_25 = arith.constant 0 : index
    %c0_26 = arith.constant 0 : index
    %52 = vector.load %arg9[%c0_25, %c0_26] : memref<1x128xf32, #tpu.memory_space<vmem>>, vector<1x128xf32>
    %53 = vector.broadcast %52 : vector<1x128xf32> to vector<16x128xf32>
    %54 = arith.mulf %33, %53 : vector<16x128xf32>
    %c0_27 = arith.constant 0 : index
    %c0_28 = arith.constant 0 : index
    %55 = vector.load %arg10[%c0_27, %c0_28] : memref<1x128xf32, #tpu.memory_space<vmem>>, vector<1x128xf32>
    %56 = vector.broadcast %55 : vector<1x128xf32> to vector<16x128xf32>
    %57 = arith.addf %54, %56 : vector<16x128xf32>
    %58 = vector.shape_cast %51 : vector<16x128xf32> to vector<2x8x128xf32>
    %59 = arith.truncf %58 : vector<2x8x128xf32> to vector<2x8x128xbf16>
    %60 = vector.shape_cast %57 : vector<16x128xf32> to vector<2x8x128xf32>
    %61 = arith.truncf %60 : vector<2x8x128xf32> to vector<2x8x128xbf16>
    %62 = vector.shape_cast %45 : vector<16x64xf32> to vector<2x8x64xf32>
    %63 = arith.truncf %62 : vector<2x8x64xf32> to vector<2x8x64xbf16>
    "tpu.trace_start"() <{level = 10 : i32, message = "bts,bks->btk"}> : () -> ()
    %cst_29 = arith.constant dense<0.000000e+00> : vector<2x8x8xf32>
    %64 = tpu.matmul %59, %61, %cst_29 {dimension_numbers = #tpu.dot_dimension_numbers<[2], [2], [1], [1], [0, 0, 0, 1, 1, 1], [0], [0]>} : vector<2x8x128xbf16>, vector<2x8x128xbf16>, vector<2x8x8xf32> -> vector<2x8x8xf32>
    "tpu.trace_stop"() : () -> ()
    %cst_30 = arith.constant 0.000000e+00 : f32
    %65 = vector.broadcast %cst_30 : f32 to vector<2x8x8xf32>
    %66 = arith.maximumf %64, %65 : vector<2x8x8xf32>
    %67 = arith.mulf %66, %66 : vector<2x8x8xf32>
    %68 = arith.truncf %67 : vector<2x8x8xf32> to vector<2x8x8xbf16>
    "tpu.trace_start"() <{level = 10 : i32, message = "btk,bke->bte"}> : () -> ()
    %cst_31 = arith.constant dense<0.000000e+00> : vector<2x8x64xf32>
    %69 = tpu.matmul %68, %63, %cst_31 {dimension_numbers = #tpu.dot_dimension_numbers<[2], [1], [1], [2], [0, 0, 0, 1, 1, 2], [0], [0]>} : vector<2x8x8xbf16>, vector<2x8x64xbf16>, vector<2x8x64xf32> -> vector<2x8x64xf32>
    "tpu.trace_stop"() : () -> ()
    %70 = vector.shape_cast %69 : vector<2x8x64xf32> to vector<16x64xf32>
    %71 = arith.mulf %39, %70 : vector<16x64xf32>
    %72 = arith.truncf %71 : vector<16x64xf32> to vector<16x64xbf16>
    %73 = arith.truncf %10 : vector<16x32xf32> to vector<16x32xbf16>
    %c0_32 = arith.constant 0 : index
    %c0_33 = arith.constant 0 : index
    %74 = vector.load %arg11[%c0_32, %c0_33] : memref<32x128xbf16, #tpu.memory_space<vmem>>, vector<32x128xbf16>
    %cst_34 = arith.constant dense<0.000000e+00> : vector<16x128xf32>
    %75 = tpu.matmul %73, %74, %cst_34 {dimension_numbers = #tpu.dot_dimension_numbers<[1], [0], [0], [1], [0, 0, 1, 1], [], []>} : vector<16x32xbf16>, vector<32x128xbf16>, vector<16x128xf32> -> vector<16x128xf32>
    %76 = arith.addf %4, %75 : vector<16x128xf32>
    %c0_35 = arith.constant 0 : index
    %c0_36 = arith.constant 0 : index
    %77 = vector.load %arg12[%c0_35, %c0_36] : memref<64x128xbf16, #tpu.memory_space<vmem>>, vector<64x128xbf16>
    %cst_37 = arith.constant dense<0.000000e+00> : vector<16x128xf32>
    %78 = tpu.matmul %72, %77, %cst_37 {dimension_numbers = #tpu.dot_dimension_numbers<[1], [0], [0], [1], [0, 0, 1, 1], [], []>} : vector<16x64xbf16>, vector<64x128xbf16>, vector<16x128xf32> -> vector<16x128xf32>
    %79 = arith.addf %76, %78 : vector<16x128xf32>
    %c0_38 = arith.constant 0 : index
    %c0_39 = arith.constant 0 : index
    %80 = vector.load %arg13[%c0_38, %c0_39] : memref<1x128xf32, #tpu.memory_space<vmem>>, vector<1x128xf32>
    %81 = vector.broadcast %80 : vector<1x128xf32> to vector<16x128xf32>
    %82 = arith.addf %79, %81 : vector<16x128xf32>
    %c0_40 = arith.constant 0 : index
    %c0_41 = arith.constant 0 : index
    %83 = vector.load %arg14[%c0_40, %c0_41] : memref<16x128xf32, #tpu.memory_space<vmem>>, vector<16x128xf32>
    tpu.vector_store %arg14[%c0_40, %c0_41], %82 {strides = array<i32>} : memref<16x128xf32, #tpu.memory_space<vmem>>, vector<16x128xf32>,
    return
  }
  func.func @transform_0(%arg0: i32) -> (i32, i32) {
    %c0_i32 = arith.constant 0 : i32
    %c0_i32_0 = arith.constant 0 : i32
    return %arg0, %c0_i32 : i32, i32
  }
  func.func @transform_1(%arg0: i32) -> (i32, i32) {
    %c0_i32 = arith.constant 0 : i32
    %c0_i32_0 = arith.constant 0 : i32
    %c0_i32_1 = arith.constant 0 : i32
    return %c0_i32, %c0_i32_0 : i32, i32
  }
  func.func @transform_2(%arg0: i32) -> (i32, i32) {
    %c0_i32 = arith.constant 0 : i32
    %c0_i32_0 = arith.constant 0 : i32
    %c0_i32_1 = arith.constant 0 : i32
    return %c0_i32, %c0_i32_0 : i32, i32
  }
  func.func @transform_3(%arg0: i32) -> (i32, i32) {
    %c0_i32 = arith.constant 0 : i32
    %c0_i32_0 = arith.constant 0 : i32
    %c0_i32_1 = arith.constant 0 : i32
    return %c0_i32, %c0_i32_0 : i32, i32
  }
  func.func @transform_4(%arg0: i32) -> (i32, i32) {
    %c0_i32 = arith.constant 0 : i32
    %c0_i32_0 = arith.constant 0 : i32
    %c0_i32_1 = arith.constant 0 : i32
    return %c0_i32, %c0_i32_0 : i32, i32
  }
  func.func @transform_5(%arg0: i32) -> (i32, i32) {
    %c0_i32 = arith.constant 0 : i32
    %c0_i32_0 = arith.constant 0 : i32
    %c0_i32_1 = arith.constant 0 : i32
    return %c0_i32, %c0_i32_0 : i32, i32
  }
  func.func @transform_6(%arg0: i32) -> (i32, i32) {
    %c0_i32 = arith.constant 0 : i32
    %c0_i32_0 = arith.constant 0 : i32
    %c0_i32_1 = arith.constant 0 : i32
    return %c0_i32, %c0_i32_0 : i32, i32
  }
  func.func @transform_7(%arg0: i32) -> (i32, i32) {
    %c0_i32 = arith.constant 0 : i32
    %c0_i32_0 = arith.constant 0 : i32
    %c0_i32_1 = arith.constant 0 : i32
    return %c0_i32, %c0_i32_0 : i32, i32
  }
  func.func @transform_8(%arg0: i32) -> (i32, i32) {
    %c0_i32 = arith.constant 0 : i32
    %c0_i32_0 = arith.constant 0 : i32
    %c0_i32_1 = arith.constant 0 : i32
    return %c0_i32, %c0_i32_0 : i32, i32
  }
  func.func @transform_9(%arg0: i32) -> (i32, i32) {
    %c0_i32 = arith.constant 0 : i32
    %c0_i32_0 = arith.constant 0 : i32
    %c0_i32_1 = arith.constant 0 : i32
    return %c0_i32, %c0_i32_0 : i32, i32
  }
  func.func @transform_10(%arg0: i32) -> (i32, i32) {
    %c0_i32 = arith.constant 0 : i32
    %c0_i32_0 = arith.constant 0 : i32
    %c0_i32_1 = arith.constant 0 : i32
    return %c0_i32, %c0_i32_0 : i32, i32
  }
  func.func @transform_11(%arg0: i32) -> (i32, i32) {
    %c0_i32 = arith.constant 0 : i32
    %c0_i32_0 = arith.constant 0 : i32
    %c0_i32_1 = arith.constant 0 : i32
    return %c0_i32, %c0_i32_0 : i32, i32
  }
  func.func @transform_12(%arg0: i32) -> (i32, i32) {
    %c0_i32 = arith.constant 0 : i32
    %c0_i32_0 = arith.constant 0 : i32
    %c0_i32_1 = arith.constant 0 : i32
    return %c0_i32, %c0_i32_0 : i32, i32
  }
  func.func @transform_13(%arg0: i32) -> (i32, i32) {
    %c0_i32 = arith.constant 0 : i32
    %c0_i32_0 = arith.constant 0 : i32
    return %arg0, %c0_i32 : i32, i32
  }
}

</mosaic_0001>

<llo_original>
// kernel: tpu_custom_call.1
$region0: #{tpu_custom_call.1}
  #allocation0 [shape = 'u32[]', space=smem, size = 0x4, offset = 0x4, fixed_abs, tag = 'smem constant byte address 0x4 - core index']
  #allocation1 [shape = 'u32[144,128]{1,0:T(1,128)}', space=vmem, size = 0x12000, scoped, tag = 'internal scratch']
  %s0 = inlined_call_operand.vmem [shape: f32[16,256], index: 0, kind: input, shape index: {}]
  %s1 = inlined_call_operand.vmem [shape: bf16[256,160], index: 1, kind: input, shape index: {}]
  %s2 = inlined_call_operand.vmem [shape: f32[1,32], index: 2, kind: input, shape index: {}]
  %s3 = inlined_call_operand.vmem [shape: bf16[32,128], index: 3, kind: input, shape index: {}]
  %s4 = inlined_call_operand.vmem [shape: bf16[32,64], index: 4, kind: input, shape index: {}]
  %s5 = inlined_call_operand.vmem [shape: bf16[32,64], index: 5, kind: input, shape index: {}]
  %s6 = inlined_call_operand.vmem [shape: f32[1,128], index: 6, kind: input, shape index: {}]
  %s7 = inlined_call_operand.vmem [shape: f32[1,128], index: 7, kind: input, shape index: {}]
  %s8 = inlined_call_operand.vmem [shape: f32[1,128], index: 8, kind: input, shape index: {}]
  %s9 = inlined_call_operand.vmem [shape: f32[1,128], index: 9, kind: input, shape index: {}]
  %s10 = inlined_call_operand.vmem [shape: bf16[32,128], index: 10, kind: input, shape index: {}]
  %s11 = inlined_call_operand.vmem [shape: bf16[64,128], index: 11, kind: input, shape index: {}]
  %s12 = inlined_call_operand.vmem [shape: f32[1,128], index: 12, kind: input, shape index: {}]
  %s13 = inlined_call_operand.hbm [shape: f32[16,128], index: 13, kind: output, shape index: {}]
  %s14 = sld [smem:[#allocation0]]
  $region62: #{tpu_custom_call.1} parent=0
    _
  %s16 = ssub.s32 1, %s14
  %s17 = scalar_select 0, %s16, %s14
  $region1: #{tpu_custom_call.1} parent=0
    #allocation2 [shape = 'u8[8192]{0}', space=vmem, size = 0x2000, scoped, tag = 'output window, operand 0, single buffered']
    #allocation3 [shape = 's32[1]{0}', space=sflag, size = 0x4, scoped, tag = 'scoped memory for tpu_custom_call.1']
    %18 = vsyncpa [#allocation3], 0
    // Predicated region
    $region2: #{tpu_custom_call.1} parent=1 // pred_check
      _
    $region3: #{tpu_custom_call.1} parent=1 // pred_check_branch
      %20 = sbr.rel (0) target = $region5
    $region4: #{tpu_custom_call.1} parent=1 // pred_region
      _
    $region5: #{tpu_custom_call.1} parent=1 // pred_fallthru
      _
    // Predicated region
    $region6: #{tpu_custom_call.1} parent=1 // pred_check
      _
    $region7: #{tpu_custom_call.1} parent=1 // pred_check_branch
      %22 = sbr.rel (0) target = $region9
    $region8: #{tpu_custom_call.1} parent=1 // pred_region
      _
    $region9: #{tpu_custom_call.1} parent=1 // pred_fallthru
      _
    // Predicated region
    $region10: #{tpu_custom_call.1} parent=1 // pred_check
      _
    $region11: #{tpu_custom_call.1} parent=1 // pred_check_branch
      %24 = sbr.rel (0) target = $region13
    $region12: #{tpu_custom_call.1} parent=1 // pred_region
      _
    $region13: #{tpu_custom_call.1} parent=1 // pred_fallthru
      _
    // Predicated region
    $region14: #{tpu_custom_call.1} parent=1 // pred_check
      _
    $region15: #{tpu_custom_call.1} parent=1 // pred_check_branch
      %26 = sbr.rel (0) target = $region17
    $region16: #{tpu_custom_call.1} parent=1 // pred_region
      _
    $region17: #{tpu_custom_call.1} parent=1 // pred_fallthru
      _
    // Predicated region
    $region18: #{tpu_custom_call.1} parent=1 // pred_check
      _
    $region19: #{tpu_custom_call.1} parent=1 // pred_check_branch
      %28 = sbr.rel (0) target = $region21
    $region20: #{tpu_custom_call.1} parent=1 // pred_region
      _
    $region21: #{tpu_custom_call.1} parent=1 // pred_fallthru
      _
    // Predicated region
    $region22: #{tpu_custom_call.1} parent=1 // pred_check
      _
    $region23: #{tpu_custom_call.1} parent=1 // pred_check_branch
      %30 = sbr.rel (0) target = $region25
    $region24: #{tpu_custom_call.1} parent=1 // pred_region
      _
    $region25: #{tpu_custom_call.1} parent=1 // pred_fallthru
      _
    // Predicated region
    $region26: #{tpu_custom_call.1} parent=1 // pred_check
      _
    $region27: #{tpu_custom_call.1} parent=1 // pred_check_branch
      %32 = sbr.rel (0) target = $region29
    $region28: #{tpu_custom_call.1} parent=1 // pred_region
      _
    $region29: #{tpu_custom_call.1} parent=1 // pred_fallthru
      _
    // Predicated region
    $region30: #{tpu_custom_call.1} parent=1 // pred_check
      _
    $region31: #{tpu_custom_call.1} parent=1 // pred_check_branch
      %34 = sbr.rel (0) target = $region33
    $region32: #{tpu_custom_call.1} parent=1 // pred_region
      _
    $region33: #{tpu_custom_call.1} parent=1 // pred_fallthru
      _
    // Predicated region
    $region34: #{tpu_custom_call.1} parent=1 // pred_check
      _
    $region35: #{tpu_custom_call.1} parent=1 // pred_check_branch
      %36 = sbr.rel (0) target = $region37
    $region36: #{tpu_custom_call.1} parent=1 // pred_region
      _
    $region37: #{tpu_custom_call.1} parent=1 // pred_fallthru
      _
    // Predicated region
    $region38: #{tpu_custom_call.1} parent=1 // pred_check
      _
    $region39: #{tpu_custom_call.1} parent=1 // pred_check_branch
      %38 = sbr.rel (0) target = $region41
    $region40: #{tpu_custom_call.1} parent=1 // pred_region
      _
    $region41: #{tpu_custom_call.1} parent=1 // pred_fallthru
      _
    // Predicated region
    $region42: #{tpu_custom_call.1} parent=1 // pred_check
      _
    $region43: #{tpu_custom_call.1} parent=1 // pred_check_branch
      %40 = sbr.rel (0) target = $region45
    $region44: #{tpu_custom_call.1} parent=1 // pred_region
      _
    $region45: #{tpu_custom_call.1} parent=1 // pred_fallthru
      _
    // Predicated region
    $region46: #{tpu_custom_call.1} parent=1 // pred_check
      _
    $region47: #{tpu_custom_call.1} parent=1 // pred_check_branch
      %42 = sbr.rel (0) target = $region49
    $region48: #{tpu_custom_call.1} parent=1 // pred_region
      _
    $region49: #{tpu_custom_call.1} parent=1 // pred_fallthru
      _
    // Predicated region
    $region50: #{tpu_custom_call.1} parent=1 // pred_check
      _
    $region51: #{tpu_custom_call.1} parent=1 // pred_check_branch
      %44 = sbr.rel (0) target = $region53
    $region52: #{tpu_custom_call.1} parent=1 // pred_region
      _
    $region53: #{tpu_custom_call.1} parent=1 // pred_fallthru
      _
    %v46 = vld [vmem:[%s0] sm:$0xff]
    %v47 = vld [vmem:[%s0 + $0x8] sm:$0xff]
    %v48 = vld [vmem:[%s0 + $0x10] sm:$0xff]
    %v49 = vld [vmem:[%s0 + $0x18] sm:$0xff]
    %v50 = vpack.c.bf16 %v48, %v46
    %v51 = vpack.c.bf16 %v49, %v47
    %v52 = vld [vmem:[%s1] sm:$0xff]
    %v53 = vld [vmem:[%s1 + $0x8] sm:$0xff]
    %v54 = vld [vmem:[%s1 + $0x10] sm:$0xff]
    %v55 = vld [vmem:[%s1 + $0x18] sm:$0xff]
    %v56 = vld [vmem:[%s1 + $0x20] sm:$0xff]
    %v57 = vld [vmem:[%s1 + $0x28] sm:$0xff]
    %v58 = vld [vmem:[%s1 + $0x30] sm:$0xff]
    %v59 = vld [vmem:[%s1 + $0x38] sm:$0xff]
    %v60 = vld [vmem:[%s1 + $0x40] sm:$0xff]
    %v61 = vld [vmem:[%s1 + $0x48] sm:$0xff]
    %v62 = vld [vmem:[%s1 + $0x50] sm:$0xff]
    %v63 = vld [vmem:[%s1 + $0x58] sm:$0xff]
    %v64 = vld [vmem:[%s1 + $0x60] sm:$0xff]
    %v65 = vld [vmem:[%s1 + $0x68] sm:$0xff]
    %v66 = vld [vmem:[%s1 + $0x70] sm:$0xff]
    %v67 = vld [vmem:[%s1 + $0x78] sm:$0xff]
    %v68 = vld [vmem:[%s1 + $0x80] sm:$0xff]
    %v69 = vld [vmem:[%s1 + $0x88] sm:$0xff]
    %v70 = vld [vmem:[%s1 + $0x90] sm:$0xff]
    %v71 = vld [vmem:[%s1 + $0x98] sm:$0xff]
    %v72 = vld [vmem:[%s1 + $0xa0] sm:$0xff]
    %v73 = vld [vmem:[%s1 + $0xa8] sm:$0xff]
    %v74 = vld [vmem:[%s1 + $0xb0] sm:$0xff]
    %v75 = vld [vmem:[%s1 + $0xb8] sm:$0xff]
    %v76 = vld [vmem:[%s1 + $0xc0] sm:$0xff]
    %v77 = vld [vmem:[%s1 + $0xc8] sm:$0xff]
    %v78 = vld [vmem:[%s1 + $0xd0] sm:$0xff]
    %v79 = vld [vmem:[%s1 + $0xd8] sm:$0xff]
    %v80 = vld [vmem:[%s1 + $0xe0] sm:$0xff]
    %v81 = vld [vmem:[%s1 + $0xe8] sm:$0xff]
    %v82 = vld [vmem:[%s1 + $0xf0] sm:$0xff]
    %v83 = vld [vmem:[%s1 + $0xf8] sm:$0xff]
    %v116 = vunpack.c.l.b16 %v52
    %v117 = vunpack.c.h.b16 %v52
    %v118 = vunpack.c.l.b16 %v53
    %v119 = vunpack.c.h.b16 %v53
    %v120 = vunpack.c.l.b16 %v54
    %v121 = vunpack.c.h.b16 %v54
    %v122 = vunpack.c.l.b16 %v55
    %v123 = vunpack.c.h.b16 %v55
    %v124 = vunpack.c.l.b16 %v56
    %v125 = vunpack.c.h.b16 %v56
    %v126 = vunpack.c.l.b16 %v57
    %v127 = vunpack.c.h.b16 %v57
    %v128 = vunpack.c.l.b16 %v58
    %v129 = vunpack.c.h.b16 %v58
    %v130 = vunpack.c.l.b16 %v59
    %v131 = vunpack.c.h.b16 %v59
    %v132 = vunpack.c.l.b16 %v60
    %v133 = vunpack.c.h.b16 %v60
    %v134 = vunpack.c.l.b16 %v61
    %v135 = vunpack.c.h.b16 %v61
    %v136 = vunpack.c.l.b16 %v62
    %v137 = vunpack.c.h.b16 %v62
    %v138 = vunpack.c.l.b16 %v63
    %v139 = vunpack.c.h.b16 %v63
    %v140 = vunpack.c.l.b16 %v64
    %v141 = vunpack.c.h.b16 %v64
    %v142 = vunpack.c.l.b16 %v65
    %v143 = vunpack.c.h.b16 %v65
    %v144 = vunpack.c.l.b16 %v66
    %v145 = vunpack.c.h.b16 %v66
    %v146 = vunpack.c.l.b16 %v67
    %v147 = vunpack.c.h.b16 %v67
    %v148 = vunpack.c.l.b16 %v68
    %v149 = vunpack.c.h.b16 %v68
    %v150 = vunpack.c.l.b16 %v69
    %v151 = vunpack.c.h.b16 %v69
    %v152 = vunpack.c.l.b16 %v70
    %v153 = vunpack.c.h.b16 %v70
    %v154 = vunpack.c.l.b16 %v71
    %v155 = vunpack.c.h.b16 %v71
    %v156 = vunpack.c.l.b16 %v72
    %v157 = vunpack.c.h.b16 %v72
    %v158 = vunpack.c.l.b16 %v73
    %v159 = vunpack.c.h.b16 %v73
    %v160 = vunpack.c.l.b16 %v74
    %v161 = vunpack.c.h.b16 %v74
    %v162 = vunpack.c.l.b16 %v75
    %v163 = vunpack.c.h.b16 %v75
    %v164 = vunpack.c.l.b16 %v76
    %v165 = vunpack.c.h.b16 %v76
    %v166 = vunpack.c.l.b16 %v77
    %v167 = vunpack.c.h.b16 %v77
    %v168 = vunpack.c.l.b16 %v78
    %v169 = vunpack.c.h.b16 %v78
    %v170 = vunpack.c.l.b16 %v79
    %v171 = vunpack.c.h.b16 %v79
    %v172 = vunpack.c.l.b16 %v80
    %v173 = vunpack.c.h.b16 %v80
    %v174 = vunpack.c.l.b16 %v81
    %v175 = vunpack.c.h.b16 %v81
    %v176 = vunpack.c.l.b16 %v82
    %v177 = vunpack.c.h.b16 %v82
    %v178 = vunpack.c.l.b16 %v83
    %v179 = vunpack.c.h.b16 %v83
    %v180 = vpack.c.b16 %v118, %v116
    %v181 = vpack.c.b16 %v119, %v117
    %v182 = vpack.c.b16 %v122, %v120
    %v183 = vpack.c.b16 %v123, %v121
    %v184 = vpack.c.b16 %v126, %v124
    %v185 = vpack.c.b16 %v127, %v125
    %v186 = vpack.c.b16 %v130, %v128
    %v187 = vpack.c.b16 %v131, %v129
    %v188 = vpack.c.b16 %v134, %v132
    %v189 = vpack.c.b16 %v135, %v133
    %v190 = vpack.c.b16 %v138, %v136
    %v191 = vpack.c.b16 %v139, %v137
    %v192 = vpack.c.b16 %v142, %v140
    %v193 = vpack.c.b16 %v143, %v141
    %v194 = vpack.c.b16 %v146, %v144
    %v195 = vpack.c.b16 %v147, %v145
    %v196 = vpack.c.b16 %v150, %v148
    %v197 = vpack.c.b16 %v151, %v149
    %v198 = vpack.c.b16 %v154, %v152
    %v199 = vpack.c.b16 %v155, %v153
    %v200 = vpack.c.b16 %v158, %v156
    %v201 = vpack.c.b16 %v159, %v157
    %v202 = vpack.c.b16 %v162, %v160
    %v203 = vpack.c.b16 %v163, %v161
    %v204 = vpack.c.b16 %v166, %v164
    %v205 = vpack.c.b16 %v167, %v165
    %v206 = vpack.c.b16 %v170, %v168
    %v207 = vpack.c.b16 %v171, %v169
    %v208 = vpack.c.b16 %v174, %v172
    %v209 = vpack.c.b16 %v175, %v173
    %v210 = vpack.c.b16 %v178, %v176
    %v211 = vpack.c.b16 %v179, %v177
    %244 = vmatprep.subr.bf16.mxu0 %v195
    %245 = vmatpush1.bf16.msra.mxu0 %v194
    %246 = vmatprep.subr.bf16.mxu0 %v193
    %247 = vmatpush1.bf16.msra.mxu0 %v192
    %248 = vmatprep.subr.bf16.mxu0 %v191
    %249 = vmatpush1.bf16.msra.mxu0 %v190
    %250 = vmatprep.subr.bf16.mxu0 %v189
    %251 = vmatpush1.bf16.msra.mxu0 %v188
    %252 = vmatprep.subr.bf16.mxu0 %v187
    %253 = vmatpush1.bf16.msra.mxu0 %v186
    %254 = vmatprep.subr.bf16.mxu0 %v185
    %255 = vmatpush1.bf16.msra.mxu0 %v184
    %256 = vmatprep.subr.bf16.mxu0 %v183
    %257 = vmatpush1.bf16.msra.mxu0 %v182
    %258 = vmatprep.subr.bf16.mxu0 %v181
    %259 = vmatpush1.bf16.msra.mxu0 %v180
    %260 = vmatprep.subr.bf16.mxu0 %v211
    %261 = vmatpush2.bf16.msra.mxu0 %v210
    %262 = vmatprep.subr.bf16.mxu0 %v209
    %263 = vmatpush2.bf16.msra.mxu0 %v208
    %264 = vmatprep.subr.bf16.mxu0 %v207
    %265 = vmatpush2.bf16.msra.mxu0 %v206
    %266 = vmatprep.subr.bf16.mxu0 %v205
    %267 = vmatpush2.bf16.msra.mxu0 %v204
    %268 = vmatprep.subr.bf16.mxu0 %v203
    %269 = vmatpush2.bf16.msra.mxu0 %v202
    %270 = vmatprep.subr.bf16.mxu0 %v201
    %271 = vmatpush2.bf16.msra.mxu0 %v200
    %272 = vmatprep.subr.bf16.mxu0 %v199
    %273 = vmatpush2.bf16.msra.mxu0 %v198
    %274 = vmatprep.subr.bf16.mxu0 %v197
    %275 = vmatpush2.bf16.msra.mxu0 %v196
    %276 = vmatprep.mubr.bf16.mxu0 %v51
    %277 = vmatmul.mubr.bf16.gmra.mxu0 %v50
    %v278 = vpop.f32.mrf.mxu0
    %v279 = vadd.f32 0.0, %v278
    %v280 = vpop.f32.mrf.mxu0
    %v281 = vadd.f32 0.0, %v280
    %v282 = vpop.f32.mrf.mxu0
    %v283 = vadd.f32 0.0, %v282
    %v284 = vpop.f32.mrf.mxu0
    %v285 = vadd.f32 0.0, %v284
    %286 = vdwg.mxu0
    %v287 = vld [vmem:[%s2] sm:$0x1]
    %v289 = vlaneseq
    %v290 = vshrl.u32 %v289, 7
    %v291 = vsub.s32 0, %v290
    %v292 = vrot.slane %v287, %v291
    %v294 = vadd.f32 %v281, %v292
    %v295 = vadd.f32 %v285, %v292
    %v296 = vmax.f32 %v294, 0.0
    %v297 = vmax.f32 %v295, 0.0
    %v298 = vmul.f32 %v296, %v296
    %v299 = vmul.f32 %v297, %v297
    %vm300 = vcmask 261120
    %v301 = vsel %vm300, %v298, 0.0
    %302 = vadd.xlane.f32.xlu0 %v301
    %v303 = vpop.xlane.xlu0 %302
    %v304 = vsel %vm300, %v299, 0.0
    %305 = vadd.xlane.f32.xlu0 %v304
    %v306 = vpop.xlane.xlu0 %305
    %v307 = vrcp.pop 32.0
    %v308 = vmul.f32 %v303, %v307
    %v309 = vmul.f32 %v306, %v307
    %v310 = vrsqrt.pop %v308
    %v311 = vrsqrt.pop %v309
    %v312 = vmin.f32 %v310, 100000.0
    %v313 = vmin.f32 %v311, 100000.0
    %v314 = vmul.f32 %v296, %v312
    %v315 = vmul.f32 %v297, %v313
    %v316 = vpack.c.bf16 %v315, %v314
    %v317 = vld [vmem:[%s3] sm:$0xf]
    %v318 = vld [vmem:[%s3 + $0x4] sm:$0xf]
    %v319 = vld [vmem:[%s3 + $0x8] sm:$0xf]
    %v320 = vld [vmem:[%s3 + $0xc] sm:$0xf]
    %v325 = vunpack.c.l.b16 %v317
    %v326 = vunpack.c.l.b16 %v318
    %v327 = vunpack.c.l.b16 %v319
    %v328 = vunpack.c.l.b16 %v320
    %v329 = vpack.c.b16 %v326, %v325
    %v330 = vpack.c.b16 %v328, %v327
    %v334 = vsel %vm300, %v316, 0
    %336 = vmatprep.subr.bf16.mxu0 0
    %337 = vmatpush1.bf16.msra.mxu0 0
    %338 = vmatprep.subr.bf16.mxu0 0
    %339 = vmatpush1.bf16.msra.mxu0 0
    %340 = vmatprep.subr.bf16.mxu0 0
    %341 = vmatpush1.bf16.msra.mxu0 0
    %342 = vmatprep.subr.bf16.mxu0 0
    %343 = vmatpush1.bf16.msra.mxu0 0
    %344 = vmatprep.subr.bf16.mxu0 0
    %345 = vmatpush1.bf16.msra.mxu0 0
    %346 = vmatprep.subr.bf16.mxu0 0
    %347 = vmatpush1.bf16.msra.mxu0 0
    %348 = vmatprep.subr.bf16.mxu0 0
    %349 = vmatpush1.bf16.msra.mxu0 %v330
    %350 = vmatprep.subr.bf16.mxu0 0
    %351 = vmatpush1.bf16.msra.mxu0 %v329
    %352 = vmatprep.subr.bf16.mxu0 0
    %353 = vmatpush2.bf16.msra.mxu0 0
    %354 = vmatprep.subr.bf16.mxu0 0
    %355 = vmatpush2.bf16.msra.mxu0 0
    %356 = vmatprep.subr.bf16.mxu0 0
    %357 = vmatpush2.bf16.msra.mxu0 0
    %358 = vmatprep.subr.bf16.mxu0 0
    %359 = vmatpush2.bf16.msra.mxu0 0
    %360 = vmatprep.subr.bf16.mxu0 0
    %361 = vmatpush2.bf16.msra.mxu0 0
    %362 = vmatprep.subr.bf16.mxu0 0
    %363 = vmatpush2.bf16.msra.mxu0 0
    %364 = vmatprep.subr.bf16.mxu0 0
    %365 = vmatpush2.bf16.msra.mxu0 0
    %366 = vmatprep.subr.bf16.mxu0 0
    %367 = vmatpush2.bf16.msra.mxu0 0
    %368 = vmatprep.mubr.bf16.mxu0 0
    %369 = vmatmul.mubr.bf16.gmra.mxu0 %v334
    %v370 = vpop.f32.mrf.mxu0
    %v371 = vadd.f32 0.0, %v370
    %v372 = vpop.f32.mrf.mxu0
    %v373 = vpop.f32.mrf.mxu0
    %v374 = vadd.f32 0.0, %v373
    %v375 = vpop.f32.mrf.mxu0
    %376 = vdwg.mxu0
    %v377 = vld [vmem:[%s4] sm:$0xf]
    %v378 = vld [vmem:[%s4 + $0x4] sm:$0xf]
    %v379 = vld [vmem:[%s4 + $0x8] sm:$0xf]
    %v380 = vld [vmem:[%s4 + $0xc] sm:$0xf]
    %v385 = vunpack.c.l.b16 %v377
    %v386 = vunpack.c.l.b16 %v378
    %v387 = vunpack.c.l.b16 %v379
    %v388 = vunpack.c.l.b16 %v380
    %v389 = vpack.c.b16 %v386, %v385
    %v390 = vpack.c.b16 %v388, %v387
    %393 = vmatprep.subr.bf16.mxu0 0
    %394 = vmatpush1.bf16.msra.mxu0 0
    %395 = vmatprep.subr.bf16.mxu0 0
    %396 = vmatpush1.bf16.msra.mxu0 0
    %397 = vmatprep.subr.bf16.mxu0 0
    %398 = vmatpush1.bf16.msra.mxu0 0
    %399 = vmatprep.subr.bf16.mxu0 0
    %400 = vmatpush1.bf16.msra.mxu0 0
    %401 = vmatprep.subr.bf16.mxu0 0
    %402 = vmatpush1.bf16.msra.mxu0 0
    %403 = vmatprep.subr.bf16.mxu0 0
    %404 = vmatpush1.bf16.msra.mxu0 0
    %405 = vmatprep.subr.bf16.mxu0 0
    %406 = vmatpush1.bf16.msra.mxu0 %v390
    %407 = vmatprep.subr.bf16.mxu0 0
    %408 = vmatpush1.bf16.msra.mxu0 %v389
    %409 = vmatprep.subr.bf16.mxu0 0
    %410 = vmatpush2.bf16.msra.mxu0 0
    %411 = vmatprep.subr.bf16.mxu0 0
    %412 = vmatpush2.bf16.msra.mxu0 0
    %413 = vmatprep.subr.bf16.mxu0 0
    %414 = vmatpush2.bf16.msra.mxu0 0
    %415 = vmatprep.subr.bf16.mxu0 0
    %416 = vmatpush2.bf16.msra.mxu0 0
    %417 = vmatprep.subr.bf16.mxu0 0
    %418 = vmatpush2.bf16.msra.mxu0 0
    %419 = vmatprep.subr.bf16.mxu0 0
    %420 = vmatpush2.bf16.msra.mxu0 0
    %421 = vmatprep.subr.bf16.mxu0 0
    %422 = vmatpush2.bf16.msra.mxu0 0
    %423 = vmatprep.subr.bf16.mxu0 0
    %424 = vmatpush2.bf16.msra.mxu0 0
    %425 = vmatprep.mubr.bf16.mxu0 0
    %426 = vmatmul.mubr.bf16.gmra.mxu0 %v334
    %v427 = vpop.f32.mrf.mxu0
    %v428 = vadd.f32 0.0, %v427
    %v429 = vpop.f32.mrf.mxu0
    %v430 = vpop.f32.mrf.mxu0
    %v431 = vadd.f32 0.0, %v430
    %v432 = vpop.f32.mrf.mxu0
    %433 = vdwg.mxu0
    %v434 = vld [vmem:[%s5] sm:$0xf]
    %v435 = vld [vmem:[%s5 + $0x4] sm:$0xf]
    %v436 = vld [vmem:[%s5 + $0x8] sm:$0xf]
    %v437 = vld [vmem:[%s5 + $0xc] sm:$0xf]
    %v442 = vunpack.c.l.b16 %v434
    %v443 = vunpack.c.l.b16 %v435
    %v444 = vunpack.c.l.b16 %v436
    %v445 = vunpack.c.l.b16 %v437
    %v446 = vpack.c.b16 %v443, %v442
    %v447 = vpack.c.b16 %v445, %v444
    %450 = vmatprep.subr.bf16.mxu0 0
    %451 = vmatpush1.bf16.msra.mxu0 0
    %452 = vmatprep.subr.bf16.mxu0 0
    %453 = vmatpush1.bf16.msra.mxu0 0
    %454 = vmatprep.subr.bf16.mxu0 0
    %455 = vmatpush1.bf16.msra.mxu0 0
    %456 = vmatprep.subr.bf16.mxu0 0
    %457 = vmatpush1.bf16.msra.mxu0 0
    %458 = vmatprep.subr.bf16.mxu0 0
    %459 = vmatpush1.bf16.msra.mxu0 0
    %460 = vmatprep.subr.bf16.mxu0 0
    %461 = vmatpush1.bf16.msra.mxu0 0
    %462 = vmatprep.subr.bf16.mxu0 0
    %463 = vmatpush1.bf16.msra.mxu0 %v447
    %464 = vmatprep.subr.bf16.mxu0 0
    %465 = vmatpush1.bf16.msra.mxu0 %v446
    %466 = vmatprep.subr.bf16.mxu0 0
    %467 = vmatpush2.bf16.msra.mxu0 0
    %468 = vmatprep.subr.bf16.mxu0 0
    %469 = vmatpush2.bf16.msra.mxu0 0
    %470 = vmatprep.subr.bf16.mxu0 0
    %471 = vmatpush2.bf16.msra.mxu0 0
    %472 = vmatprep.subr.bf16.mxu0 0
    %473 = vmatpush2.bf16.msra.mxu0 0
    %474 = vmatprep.subr.bf16.mxu0 0
    %475 = vmatpush2.bf16.msra.mxu0 0
    %476 = vmatprep.subr.bf16.mxu0 0
    %477 = vmatpush2.bf16.msra.mxu0 0
    %478 = vmatprep.subr.bf16.mxu0 0
    %479 = vmatpush2.bf16.msra.mxu0 0
    %480 = vmatprep.subr.bf16.mxu0 0
    %481 = vmatpush2.bf16.msra.mxu0 0
    %482 = vmatprep.mubr.bf16.mxu0 0
    %483 = vmatmul.mubr.bf16.gmra.mxu0 %v334
    %v484 = vpop.f32.mrf.mxu0
    %v485 = vadd.f32 0.0, %v484
    %v486 = vpop.f32.mrf.mxu0
    %v487 = vpop.f32.mrf.mxu0
    %v488 = vadd.f32 0.0, %v487
    %v489 = vpop.f32.mrf.mxu0
    %490 = vdwg.mxu0
    %v491 = vxor.u32 %v371, 2147483648
    %v492 = vxor.u32 %v374, 2147483648
    %v493 = vmul.f32 %v491, 1.442695
    %v494 = vpow.pop %v493
    %v495 = vmul.f32 %v492, 1.442695
    %v496 = vpow.pop %v495
    %v497 = vadd.f32 %v494, 1.0
    %v498 = vadd.f32 %v496, 1.0
    %v499 = vrcp.pop %v497
    %v500 = vmul.f32 1.0, %v499
    %v501 = vrcp.pop %v498
    %v502 = vmul.f32 1.0, %v501
    %v503 = vmul.f32 %v371, %v500
    %v504 = vmul.f32 %v374, %v502
    %v505 = vxor.u32 %v428, 2147483648
    %v506 = vxor.u32 %v431, 2147483648
    %v507 = vmul.f32 %v505, 1.442695
    %v508 = vpow.pop %v507
    %v509 = vmul.f32 %v506, 1.442695
    %v510 = vpow.pop %v509
    %v511 = vadd.f32 %v508, 1.0
    %v512 = vadd.f32 %v510, 1.0
    %v513 = vrcp.pop %v511
    %v514 = vmul.f32 1.0, %v513
    %v515 = vrcp.pop %v512
    %v516 = vmul.f32 1.0, %v515
    %v517 = vmul.f32 %v428, %v514
    %v518 = vmul.f32 %v431, %v516
    %v519 = vxor.u32 %v485, 2147483648
    %v520 = vxor.u32 %v488, 2147483648
    %v521 = vmul.f32 %v519, 1.442695
    %v522 = vpow.pop %v521
    %v523 = vmul.f32 %v520, 1.442695
    %v524 = vpow.pop %v523
    %v525 = vadd.f32 %v522, 1.0
    %v526 = vadd.f32 %v524, 1.0
    %v527 = vrcp.pop %v525
    %v528 = vmul.f32 1.0, %v527
    %v529 = vrcp.pop %v526
    %v530 = vmul.f32 1.0, %v529
    %v531 = vmul.f32 %v485, %v528
    %v532 = vmul.f32 %v488, %v530
    %v533 = vld [vmem:[%s6] sm:$0x1]
    %v535 = vlaneseq
    %v536 = vshrl.u32 %v535, 7
    %v537 = vsub.s32 0, %v536
    %v538 = vrot.slane %v533, %v537
    %v540 = vmul.f32 %v503, %v538
    %v541 = vmul.f32 %v504, %v538
    %v542 = vld [vmem:[%s7] sm:$0x1]
    %v544 = vlaneseq
    %v545 = vshrl.u32 %v544, 7
    %v546 = vsub.s32 0, %v545
    %v547 = vrot.slane %v542, %v546
    %v549 = vadd.f32 %v540, %v547
    %v550 = vadd.f32 %v541, %v547
    %v551 = vld [vmem:[%s8] sm:$0x1]
    %v553 = vlaneseq
    %v554 = vshrl.u32 %v553, 7
    %v555 = vsub.s32 0, %v554
    %v556 = vrot.slane %v551, %v555
    %v558 = vmul.f32 %v503, %v556
    %v559 = vmul.f32 %v504, %v556
    %v560 = vld [vmem:[%s9] sm:$0x1]
    %v562 = vlaneseq
    %v563 = vshrl.u32 %v562, 7
    %v564 = vsub.s32 0, %v563
    %v565 = vrot.slane %v560, %v564
    %v567 = vadd.f32 %v558, %v565
    %v568 = vadd.f32 %v559, %v565
    %v569 = vpack.c.bf16 %v549, %v549
    %v570 = vpack.c.bf16 %v550, %v550
    %v571 = vpack.c.bf16 %v567, %v567
    %v572 = vpack.c.bf16 %v568, %v568
    %v573 = vpack.c.bf16 %v531, %v531
    %v574 = vpack.c.bf16 %v532, %v532
    %575 = vmatprep.subr.bf16.mxu0 0
    %576 = vmatpush1.bf16.xpose.msra.mxu0 0
    %577 = vmatprep.subr.bf16.mxu0 0
    %578 = vmatpush1.bf16.xpose.msra.mxu0 0
    %579 = vmatprep.subr.bf16.mxu0 0
    %580 = vmatpush1.bf16.xpose.msra.mxu0 0
    %581 = vmatprep.subr.bf16.mxu0 0
    %582 = vmatpush1.bf16.xpose.msra.mxu0 0
    %583 = vmatprep.subr.bf16.mxu0 0
    %584 = vmatpush1.bf16.xpose.msra.mxu0 0
    %585 = vmatprep.subr.bf16.mxu0 0
    %586 = vmatpush1.bf16.xpose.msra.mxu0 0
    %587 = vmatprep.subr.bf16.mxu0 0
    %588 = vmatpush1.bf16.xpose.msra.mxu0 0
    %589 = vmatprep.subr.bf16.mxu0 0
    %590 = vmatpush1.bf16.xpose.msra.mxu0 %v571
    %591 = vmatprep.subr.bf16.mxu0 0
    %592 = vmatpush2.bf16.xpose.msra.mxu0 0
    %593 = vmatprep.subr.bf16.mxu0 0
    %594 = vmatpush2.bf16.xpose.msra.mxu0 0
    %595 = vmatprep.subr.bf16.mxu0 0
    %596 = vmatpush2.bf16.xpose.msra.mxu0 0
    %597 = vmatprep.subr.bf16.mxu0 0
    %598 = vmatpush2.bf16.xpose.msra.mxu0 0
    %599 = vmatprep.subr.bf16.mxu0 0
    %600 = vmatpush2.bf16.xpose.msra.mxu0 0
    %601 = vmatprep.subr.bf16.mxu0 0
    %602 = vmatpush2.bf16.xpose.msra.mxu0 0
    %603 = vmatprep.subr.bf16.mxu0 0
    %604 = vmatpush2.bf16.xpose.msra.mxu0 0
    %605 = vmatprep.subr.bf16.mxu0 0
    %606 = vmatpush2.bf16.xpose.msra.mxu0 0
    %607 = vmatprep.mubr.bf16.mxu0 0
    %608 = vmatmul.mubr.bf16.gmra.mxu0 %v569
    %v609 = vpop.f32.mrf.mxu0
    %v610 = vadd.f32 0.0, %v609
    %v611 = vpop.f32.mrf.mxu0
    %v612 = vpop.f32.mrf.mxu0
    %v613 = vpop.f32.mrf.mxu0
    %614 = vdwg.mxu0
    %615 = vmatprep.subr.bf16.mxu0 0
    %616 = vmatpush1.bf16.xpose.msra.mxu0 0
    %617 = vmatprep.subr.bf16.mxu0 0
    %618 = vmatpush1.bf16.xpose.msra.mxu0 0
    %619 = vmatprep.subr.bf16.mxu0 0
    %620 = vmatpush1.bf16.xpose.msra.mxu0 0
    %621 = vmatprep.subr.bf16.mxu0 0
    %622 = vmatpush1.bf16.xpose.msra.mxu0 0
    %623 = vmatprep.subr.bf16.mxu0 0
    %624 = vmatpush1.bf16.xpose.msra.mxu0 0
    %625 = vmatprep.subr.bf16.mxu0 0
    %626 = vmatpush1.bf16.xpose.msra.mxu0 0
    %627 = vmatprep.subr.bf16.mxu0 0
    %628 = vmatpush1.bf16.xpose.msra.mxu0 0
    %629 = vmatprep.subr.bf16.mxu0 0
    %630 = vmatpush1.bf16.xpose.msra.mxu0 %v572
    %631 = vmatprep.subr.bf16.mxu0 0
    %632 = vmatpush2.bf16.xpose.msra.mxu0 0
    %633 = vmatprep.subr.bf16.mxu0 0
    %634 = vmatpush2.bf16.xpose.msra.mxu0 0
    %635 = vmatprep.subr.bf16.mxu0 0
    %636 = vmatpush2.bf16.xpose.msra.mxu0 0
    %637 = vmatprep.subr.bf16.mxu0 0
    %638 = vmatpush2.bf16.xpose.msra.mxu0 0
    %639 = vmatprep.subr.bf16.mxu0 0
    %640 = vmatpush2.bf16.xpose.msra.mxu0 0
    %641 = vmatprep.subr.bf16.mxu0 0
    %642 = vmatpush2.bf16.xpose.msra.mxu0 0
    %643 = vmatprep.subr.bf16.mxu0 0
    %644 = vmatpush2.bf16.xpose.msra.mxu0 0
    %645 = vmatprep.subr.bf16.mxu0 0
    %646 = vmatpush2.bf16.xpose.msra.mxu0 0
    %647 = vmatprep.mubr.bf16.mxu0 0
    %648 = vmatmul.mubr.bf16.gmra.mxu0 %v570
    %v649 = vpop.f32.mrf.mxu0
    %v650 = vadd.f32 0.0, %v649
    %v651 = vpop.f32.mrf.mxu0
    %v652 = vpop.f32.mrf.mxu0
    %v653 = vpop.f32.mrf.mxu0
    %654 = vdwg.mxu0
    %v655 = vmax.f32 %v610, 0.0
    %v656 = vmax.f32 %v650, 0.0
    %v657 = vmul.f32 %v655, %v655
    %v658 = vmul.f32 %v656, %v656
    %v659 = vpack.c.bf16 %v657, %v657
    %v660 = vpack.c.bf16 %v658, %v658
    %vm661 = vcmask 64512
    %v663 = vsel %vm661, %v659, 0
    %vm665 = vcmask 1043456
    %v667 = vsel %vm665, %v573, 0
    %669 = vmatprep.subr.bf16.mxu0 0
    %670 = vmatpush1.bf16.msra.mxu0 0
    %671 = vmatprep.subr.bf16.mxu0 0
    %672 = vmatpush1.bf16.msra.mxu0 0
    %673 = vmatprep.subr.bf16.mxu0 0
    %674 = vmatpush1.bf16.msra.mxu0 0
    %675 = vmatprep.subr.bf16.mxu0 0
    %676 = vmatpush1.bf16.msra.mxu0 0
    %677 = vmatprep.subr.bf16.mxu0 0
    %678 = vmatpush1.bf16.msra.mxu0 0
    %679 = vmatprep.subr.bf16.mxu0 0
    %680 = vmatpush1.bf16.msra.mxu0 0
    %681 = vmatprep.subr.bf16.mxu0 0
    %682 = vmatpush1.bf16.msra.mxu0 0
    %683 = vmatprep.subr.bf16.mxu0 0
    %684 = vmatpush1.bf16.msra.mxu0 %v667
    %685 = vmatprep.subr.bf16.mxu0 0
    %686 = vmatpush2.bf16.msra.mxu0 0
    %687 = vmatprep.subr.bf16.mxu0 0
    %688 = vmatpush2.bf16.msra.mxu0 0
    %689 = vmatprep.subr.bf16.mxu0 0
    %690 = vmatpush2.bf16.msra.mxu0 0
    %691 = vmatprep.subr.bf16.mxu0 0
    %692 = vmatpush2.bf16.msra.mxu0 0
    %693 = vmatprep.subr.bf16.mxu0 0
    %694 = vmatpush2.bf16.msra.mxu0 0
    %695 = vmatprep.subr.bf16.mxu0 0
    %696 = vmatpush2.bf16.msra.mxu0 0
    %697 = vmatprep.subr.bf16.mxu0 0
    %698 = vmatpush2.bf16.msra.mxu0 0
    %699 = vmatprep.subr.bf16.mxu0 0
    %700 = vmatpush2.bf16.msra.mxu0 0
    %701 = vmatprep.mubr.bf16.mxu0 0
    %702 = vmatmul.mubr.bf16.gmra.mxu0 %v663
    %v703 = vpop.f32.mrf.mxu0
    %v704 = vadd.f32 0.0, %v703
    %v705 = vpop.f32.mrf.mxu0
    %v706 = vpop.f32.mrf.mxu0
    %v707 = vpop.f32.mrf.mxu0
    %708 = vdwg.mxu0
    %v710 = vsel %vm661, %v660, 0
    %v713 = vsel %vm665, %v574, 0
    %715 = vmatprep.subr.bf16.mxu0 0
    %716 = vmatpush1.bf16.msra.mxu0 0
    %717 = vmatprep.subr.bf16.mxu0 0
    %718 = vmatpush1.bf16.msra.mxu0 0
    %719 = vmatprep.subr.bf16.mxu0 0
    %720 = vmatpush1.bf16.msra.mxu0 0
    %721 = vmatprep.subr.bf16.mxu0 0
    %722 = vmatpush1.bf16.msra.mxu0 0
    %723 = vmatprep.subr.bf16.mxu0 0
    %724 = vmatpush1.bf16.msra.mxu0 0
    %725 = vmatprep.subr.bf16.mxu0 0
    %726 = vmatpush1.bf16.msra.mxu0 0
    %727 = vmatprep.subr.bf16.mxu0 0
    %728 = vmatpush1.bf16.msra.mxu0 0
    %729 = vmatprep.subr.bf16.mxu0 0
    %730 = vmatpush1.bf16.msra.mxu0 %v713
    %731 = vmatprep.subr.bf16.mxu0 0
    %732 = vmatpush2.bf16.msra.mxu0 0
    %733 = vmatprep.subr.bf16.mxu0 0
    %734 = vmatpush2.bf16.msra.mxu0 0
    %735 = vmatprep.subr.bf16.mxu0 0
    %736 = vmatpush2.bf16.msra.mxu0 0
    %737 = vmatprep.subr.bf16.mxu0 0
    %738 = vmatpush2.bf16.msra.mxu0 0
    %739 = vmatprep.subr.bf16.mxu0 0
    %740 = vmatpush2.bf16.msra.mxu0 0
    %741 = vmatprep.subr.bf16.mxu0 0
    %742 = vmatpush2.bf16.msra.mxu0 0
    %743 = vmatprep.subr.bf16.mxu0 0
    %744 = vmatpush2.bf16.msra.mxu0 0
    %745 = vmatprep.subr.bf16.mxu0 0
    %746 = vmatpush2.bf16.msra.mxu0 0
    %747 = vmatprep.mubr.bf16.mxu0 0
    %748 = vmatmul.mubr.bf16.gmra.mxu0 %v710
    %v749 = vpop.f32.mrf.mxu0
    %v750 = vadd.f32 0.0, %v749
    %v751 = vpop.f32.mrf.mxu0
    %v752 = vpop.f32.mrf.mxu0
    %v753 = vpop.f32.mrf.mxu0
    %754 = vdwg.mxu0
    %v755 = vmul.f32 %v517, %v704
    %v756 = vmul.f32 %v518, %v750
    %v757 = vpack.c.bf16 %v756, %v755
    %v758 = vpack.c.bf16 %v297, %v296
    %v759 = vld [vmem:[%s10] sm:$0xf]
    %v760 = vld [vmem:[%s10 + $0x4] sm:$0xf]
    %v761 = vld [vmem:[%s10 + $0x8] sm:$0xf]
    %v762 = vld [vmem:[%s10 + $0xc] sm:$0xf]
    %v767 = vunpack.c.l.b16 %v759
    %v768 = vunpack.c.l.b16 %v760
    %v769 = vunpack.c.l.b16 %v761
    %v770 = vunpack.c.l.b16 %v762
    %v771 = vpack.c.b16 %v768, %v767
    %v772 = vpack.c.b16 %v770, %v769
    %v776 = vsel %vm300, %v758, 0
    %778 = vmatprep.subr.bf16.mxu0 0
    %779 = vmatpush1.bf16.msra.mxu0 0
    %780 = vmatprep.subr.bf16.mxu0 0
    %781 = vmatpush1.bf16.msra.mxu0 0
    %782 = vmatprep.subr.bf16.mxu0 0
    %783 = vmatpush1.bf16.msra.mxu0 0
    %784 = vmatprep.subr.bf16.mxu0 0
    %785 = vmatpush1.bf16.msra.mxu0 0
    %786 = vmatprep.subr.bf16.mxu0 0
    %787 = vmatpush1.bf16.msra.mxu0 0
    %788 = vmatprep.subr.bf16.mxu0 0
    %789 = vmatpush1.bf16.msra.mxu0 0
    %790 = vmatprep.subr.bf16.mxu0 0
    %791 = vmatpush1.bf16.msra.mxu0 %v772
    %792 = vmatprep.subr.bf16.mxu0 0
    %793 = vmatpush1.bf16.msra.mxu0 %v771
    %794 = vmatprep.subr.bf16.mxu0 0
    %795 = vmatpush2.bf16.msra.mxu0 0
    %796 = vmatprep.subr.bf16.mxu0 0
    %797 = vmatpush2.bf16.msra.mxu0 0
    %798 = vmatprep.subr.bf16.mxu0 0
    %799 = vmatpush2.bf16.msra.mxu0 0
    %800 = vmatprep.subr.bf16.mxu0 0
    %801 = vmatpush2.bf16.msra.mxu0 0
    %802 = vmatprep.subr.bf16.mxu0 0
    %803 = vmatpush2.bf16.msra.mxu0 0
    %804 = vmatprep.subr.bf16.mxu0 0
    %805 = vmatpush2.bf16.msra.mxu0 0
    %806 = vmatprep.subr.bf16.mxu0 0
    %807 = vmatpush2.bf16.msra.mxu0 0
    %808 = vmatprep.subr.bf16.mxu0 0
    %809 = vmatpush2.bf16.msra.mxu0 0
    %810 = vmatprep.mubr.bf16.mxu0 0
    %811 = vmatmul.mubr.bf16.gmra.mxu0 %v776
    %v812 = vpop.f32.mrf.mxu0
    %v813 = vadd.f32 0.0, %v812
    %v814 = vpop.f32.mrf.mxu0
    %v815 = vpop.f32.mrf.mxu0
    %v816 = vadd.f32 0.0, %v815
    %v817 = vpop.f32.mrf.mxu0
    %818 = vdwg.mxu0
    %v819 = vadd.f32 %v279, %v813
    %v820 = vadd.f32 %v283, %v816
    %v821 = vld [vmem:[%s11] sm:$0xf]
    %v822 = vld [vmem:[%s11 + $0x4] sm:$0xf]
    %v823 = vld [vmem:[%s11 + $0x8] sm:$0xf]
    %v824 = vld [vmem:[%s11 + $0xc] sm:$0xf]
    %v825 = vld [vmem:[%s11 + $0x10] sm:$0xf]
    %v826 = vld [vmem:[%s11 + $0x14] sm:$0xf]
    %v827 = vld [vmem:[%s11 + $0x18] sm:$0xf]
    %v828 = vld [vmem:[%s11 + $0x1c] sm:$0xf]
    %v837 = vunpack.c.l.b16 %v821
    %v838 = vunpack.c.l.b16 %v822
    %v839 = vunpack.c.l.b16 %v823
    %v840 = vunpack.c.l.b16 %v824
    %v841 = vunpack.c.l.b16 %v825
    %v842 = vunpack.c.l.b16 %v826
    %v843 = vunpack.c.l.b16 %v827
    %v844 = vunpack.c.l.b16 %v828
    %v845 = vpack.c.b16 %v838, %v837
    %v846 = vpack.c.b16 %v840, %v839
    %v847 = vpack.c.b16 %v842, %v841
    %v848 = vpack.c.b16 %v844, %v843
    %vm853 = vcmask 523264
    %v855 = vsel %vm853, %v757, 0
    %857 = vmatprep.subr.bf16.mxu0 0
    %858 = vmatpush1.bf16.msra.mxu0 0
    %859 = vmatprep.subr.bf16.mxu0 0
    %860 = vmatpush1.bf16.msra.mxu0 0
    %861 = vmatprep.subr.bf16.mxu0 0
    %862 = vmatpush1.bf16.msra.mxu0 0
    %863 = vmatprep.subr.bf16.mxu0 0
    %864 = vmatpush1.bf16.msra.mxu0 0
    %865 = vmatprep.subr.bf16.mxu0 0
    %866 = vmatpush1.bf16.msra.mxu0 %v848
    %867 = vmatprep.subr.bf16.mxu0 0
    %868 = vmatpush1.bf16.msra.mxu0 %v847
    %869 = vmatprep.subr.bf16.mxu0 0
    %870 = vmatpush1.bf16.msra.mxu0 %v846
    %871 = vmatprep.subr.bf16.mxu0 0
    %872 = vmatpush1.bf16.msra.mxu0 %v845
    %873 = vmatprep.subr.bf16.mxu0 0
    %874 = vmatpush2.bf16.msra.mxu0 0
    %875 = vmatprep.subr.bf16.mxu0 0
    %876 = vmatpush2.bf16.msra.mxu0 0
    %877 = vmatprep.subr.bf16.mxu0 0
    %878 = vmatpush2.bf16.msra.mxu0 0
    %879 = vmatprep.subr.bf16.mxu0 0
    %880 = vmatpush2.bf16.msra.mxu0 0
    %881 = vmatprep.subr.bf16.mxu0 0
    %882 = vmatpush2.bf16.msra.mxu0 0
    %883 = vmatprep.subr.bf16.mxu0 0
    %884 = vmatpush2.bf16.msra.mxu0 0
    %885 = vmatprep.subr.bf16.mxu0 0
    %886 = vmatpush2.bf16.msra.mxu0 0
    %887 = vmatprep.subr.bf16.mxu0 0
    %888 = vmatpush2.bf16.msra.mxu0 0
    %889 = vmatprep.mubr.bf16.mxu0 0
    %890 = vmatmul.mubr.bf16.gmra.mxu0 %v855
    %v891 = vpop.f32.mrf.mxu0
    %v892 = vadd.f32 0.0, %v891
    %v893 = vpop.f32.mrf.mxu0
    %v894 = vpop.f32.mrf.mxu0
    %v895 = vadd.f32 0.0, %v894
    %v896 = vpop.f32.mrf.mxu0
    %897 = vdwg.mxu0
    %v898 = vadd.f32 %v819, %v892
    %v899 = vadd.f32 %v820, %v895
    %v900 = vld [vmem:[%s12] sm:$0x1]
    %v902 = vlaneseq
    %v903 = vshrl.u32 %v902, 7
    %v904 = vsub.s32 0, %v903
    %v905 = vrot.slane %v900, %v904
    %v907 = vadd.f32 %v898, %v905
    %v908 = vadd.f32 %v899, %v905
    %909 = vst [vmem:[#allocation2] sm:$0xff] %v907
    %910 = vst [vmem:[#allocation2 + $0x8] sm:$0xff] %v908
    // Predicated region
    $region54: #{tpu_custom_call.1} parent=1 // pred_check
      _
    $region55: #{tpu_custom_call.1} parent=1 // pred_check_branch
      %912 = sbr.rel (0) target = $region57
    $region56: #{tpu_custom_call.1} parent=1 // pred_region
      %s914 = ssub.s32 256, 256
      %915 = vsyncadd [#allocation3], %s914
      %s916 = sshll.u32 [#allocation2], 4
      %s917 = int_to_ptr.vmem [resolvable:$true] %s916
      %922 = dma.vmem_to_hbm [thread:$0]  %s917, 256, %s13, [#allocation3], 128, 128, 8
    $region57: #{tpu_custom_call.1} parent=1 // pred_fallthru
      _
    // Predicated region
    $region58: #{tpu_custom_call.1} parent=1 // pred_check
      _
    $region59: #{tpu_custom_call.1} parent=1 // pred_check_branch
      %924 = sbr.rel (0) target = $region61
    $region60: #{tpu_custom_call.1} parent=1 // pred_region
      %925 = dma.done [#allocation3], 256
    $region61: #{tpu_custom_call.1} parent=1 // pred_fallthru
      _
    %926 = vsyncpa [#allocation3], 1

</llo_original>
